<compile_context>
chip_gen: v5e
topology: v5e:2x2
jax: 0.10.0
libtpu: 0.0.40
codegen_flags: <defaults>
</compile_context>

<pallas_src>
import functools

import jax
import jax.numpy as jnp
from jax import lax
from jax.experimental import pallas as pl
from jax.experimental.pallas import tpu as pltpu


def _default_exp_dtype():
    """bf16 exp uses the EUP bf16 path on v6e/v7x; keep f32 on v5e and older."""
    try:
        kind = jax.devices()[0].device_kind.lower()
    except Exception:
        return jnp.float32
    if any(tag in kind for tag in ("v2", "v3", "v4", "v5")):
        return jnp.float32
    return jnp.bfloat16


def _pick_tile(n, cap):
    """Largest multiple-of-128 divisor of n that is <= cap (n is a multiple of 128)."""
    cap = max(128, (cap // 128) * 128)
    t = min(cap, n)
    t = (t // 128) * 128
    while n % t != 0:
        t -= 128
    return t


# ---------------------------------------------------------------------------
# Kernel 1: fused 1x1-conv Q/K/V projection — runs ONCE per (batch, spatial tile).
# ---------------------------------------------------------------------------
def _qkv_proj_kernel(x_ref, wq_ref, bq_ref, wk_ref, bk_ref, wv_ref, bv_ref,
                     q_ref, k_ref, v_ref):
    x = x_ref[0].astype(jnp.bfloat16)                         # (C, tn)

    def proj(w_ref, b_ref):
        # bf16 MXU matmul, f32 accumulation, f32 bias add.
        return jnp.dot(w_ref[...], x, preferred_element_type=jnp.float32) + b_ref[...]

    q_ref[0] = proj(wq_ref, bq_ref).astype(q_ref.dtype)       # (Cq, tn) bf16
    k_ref[0] = proj(wk_ref, bk_ref).astype(k_ref.dtype)       # (Cq, tn) bf16
    v_ref[0] = proj(wv_ref, bv_ref).astype(v_ref.dtype)       # (C,  tn) bf16


# ---------------------------------------------------------------------------
# Kernel 2: flash-style attention over projected Q/K/V with online softmax.
# ---------------------------------------------------------------------------
def _flash_attn_kernel(q_ref, k_ref, v_ref, x_ref, gamma_ref, nvalid_ref,
                       o_ref, m_sc, l_sc, acc_sc, *, mask_padding, exp_dtype):
    ki = pl.program_id(2)
    n_kv = pl.num_programs(2)

    # Reset online-softmax state once per (batch, query tile).
    @pl.when(ki == 0)
    def _():
        m_sc[...] = jnp.full(m_sc.shape, -jnp.inf, dtype=m_sc.dtype)
        l_sc[...] = jnp.zeros(l_sc.shape, dtype=l_sc.dtype)
        acc_sc[...] = jnp.zeros(acc_sc.shape, dtype=acc_sc.dtype)

    q = q_ref[0]                                               # (Cq, tq)  bf16
    k = k_ref[0]                                               # (Cq, tkv) bf16
    v = v_ref[0]                                               # (C,  tkv) bf16

    # Energy tile s[j, i] = <k_j, q_i> (keys on sublanes, queries on lanes).
    # bf16 MXU matmul with f32 accumulation; no transpose of either operand.
    s = lax.dot_general(k, q, dimension_numbers=(((0,), (0,)), ((), ())),
                        preferred_element_type=jnp.float32)    # (tkv, tq) f32

    if mask_padding:
        tkv = k.shape[1]
        key_pos = ki * tkv + lax.broadcasted_iota(jnp.int32, s.shape, 0)
        s = jnp.where(key_pos < nvalid_ref[0], s, -jnp.inf)

    # Online softmax over key positions (axis 0); running stats in f32, the big
    # exp in exp_dtype (bf16 EUP path on v6e/v7x, f32 on v5e).
    m_prev = m_sc[...]                                         # (1, tq)
    m_new = jnp.maximum(m_prev, jnp.max(s, axis=0, keepdims=True))
    alpha = jnp.exp(m_prev - m_new)                            # (1, tq)
    p = jnp.exp((s - m_new).astype(exp_dtype))                 # (tkv, tq)
    l_sc[...] = alpha * l_sc[...] + jnp.sum(p, axis=0, keepdims=True,
                                            dtype=jnp.float32)
    acc_sc[...] = alpha * acc_sc[...] + jnp.dot(
        v, p.astype(jnp.bfloat16), preferred_element_type=jnp.float32)  # (C, tq)
    m_sc[...] = m_new

    # Finalize: normalize, gamma-scale, residual add; lane-dense (N-last) store.
    @pl.when(ki == n_kv - 1)
    def _():
        inv_l = pl.reciprocal(l_sc[...], approx=True)          # (1, tq)
        out = acc_sc[...] * inv_l                              # (C, tq) f32
        o_ref[0] = (gamma_ref[0] * out + x_ref[0]).astype(o_ref.dtype)


def self_attn_pallas(x_nchw, wq, bq, wk, bk, wv, bv, gamma, *,
                     max_tq=512, max_tkv=256, proj_tile=512,
                     vmem_limit_bytes=None, exp_dtype=None):
    """Forward pass of Self_Attn. Weights in PyTorch conv layout (out, in); biases 1-D."""
    B, C, H, W = x_nchw.shape
    N = H * W
    Cq = wq.shape[0]
    out_dtype = x_nchw.dtype

    if exp_dtype is None:
        exp_dtype = _default_exp_dtype()

    # NCHW -> (B, C, N): contiguous reshape. Pad N up to a multiple of 128 so all
    # tiles are lane-dense and the score tile stays bounded for any H, W.
    Np = ((N + 127) // 128) * 128
    x = x_nchw.reshape(B, C, N)
    if Np != N:
        x = jnp.pad(x, ((0, 0), (0, 0), (0, Np - N)))
    mask_padding = Np != N

    # ---- 1) fused Q/K/V projection (x streamed exactly once per batch) ----------
    compute_dtype = jnp.bfloat16
    wq_b, wk_b, wv_b = (w.astype(compute_dtype) for w in (wq, wk, wv))
    bq2 = bq.reshape(-1, 1).astype(jnp.float32)
    bk2 = bk.reshape(-1, 1).astype(jnp.float32)
    bv2 = bv.reshape(-1, 1).astype(jnp.float32)

    tn = _pick_tile(Np, proj_tile)
    q_p, k_p, v_p = pl.pallas_call(
        _qkv_proj_kernel,
        out_shape=(jax.ShapeDtypeStruct((B, Cq, Np), compute_dtype),
                   jax.ShapeDtypeStruct((B, Cq, Np), compute_dtype),
                   jax.ShapeDtypeStruct((B, C, Np), compute_dtype)),
        grid_spec=pltpu.PrefetchScalarGridSpec(
            num_scalar_prefetch=0,
            grid=(B, Np // tn),
            in_specs=[
                pl.BlockSpec((1, C, tn), lambda b, i: (b, 0, i)),   # x tile
                pl.BlockSpec((Cq, C), lambda b, i: (0, 0)),         # Wq
                pl.BlockSpec((Cq, 1), lambda b, i: (0, 0)),         # bq
                pl.BlockSpec((Cq, C), lambda b, i: (0, 0)),         # Wk
                pl.BlockSpec((Cq, 1), lambda b, i: (0, 0)),         # bk
                pl.BlockSpec((C, C), lambda b, i: (0, 0)),          # Wv
                pl.BlockSpec((C, 1), lambda b, i: (0, 0)),          # bv
            ],
            out_specs=[
                pl.BlockSpec((1, Cq, tn), lambda b, i: (b, 0, i)),  # Q
                pl.BlockSpec((1, Cq, tn), lambda b, i: (b, 0, i)),  # K
                pl.BlockSpec((1, C, tn), lambda b, i: (b, 0, i)),   # V
            ]),
        compiler_params=pltpu.CompilerParams(
            dimension_semantics=("parallel", "parallel")),
    )(x, wq_b, bq2, wk_b, bk2, wv_b, bv2)

    # ---- 2) flash attention over the projected tensors --------------------------
    tq = _pick_tile(Np, max_tq)
    # v7x megacore: ensure >= 2 parallel (b, q-tile) units when possible.
    if B * (Np // tq) < 2 and tq > 128:
        tq = _pick_tile(Np, tq // 2)
    tkv = _pick_tile(Np, max_tkv)
    n_q, n_kv = Np // tq, Np // tkv

    if vmem_limit_bytes is None:
        db = 2  # default double buffering per pipelined stream
        est = (db * (Cq * tq + Cq * tkv + C * tkv) * 2       # q/k/v tiles (bf16)
               + db * C * tq * x.dtype.itemsize              # residual x tiles
               + db * C * tq * 4                             # output tiles
               + (C * tq + 2 * tq) * 4                       # acc/m/l scratch (f32)
               + 4 * tkv * tq * 4)                           # live score temporaries
        vmem_limit_bytes = min(max(2 * est + (2 << 20), 16 << 20), 64 << 20)

    flops = 2 * B * Np * Np * (Cq + C) + 2 * B * Np * C * (C + 2 * Cq)
    transcendentals = B * Np * Np
    bytes_accessed = (2 * B * C * Np * x.dtype.itemsize        # x: proj read + residual read
                      + 2 * B * (2 * Cq + C) * Np * 2          # q/k/v write + first read
                      + B * max(n_q - 1, 0) * (Cq + C) * Np * 2  # k/v re-reads per q tile
                      + B * C * Np * x.dtype.itemsize)         # output write

    gamma1 = jnp.asarray(gamma, jnp.float32).reshape((1,))
    n_valid = jnp.array([N], dtype=jnp.int32)

    kernel = functools.partial(_flash_attn_kernel,
                               mask_padding=mask_padding, exp_dtype=exp_dtype)

    out = pl.pallas_call(
        kernel,
        out_shape=jax.ShapeDtypeStruct((B, C, Np), out_dtype),
        grid_spec=pltpu.PrefetchScalarGridSpec(
            num_scalar_prefetch=0,
            grid=(B, n_q, n_kv),
            in_specs=[
                pl.BlockSpec((1, Cq, tq), lambda b, qi, ki: (b, 0, qi)),    # Q tile
                pl.BlockSpec((1, Cq, tkv), lambda b, qi, ki: (b, 0, ki)),   # K tile
                pl.BlockSpec((1, C, tkv), lambda b, qi, ki: (b, 0, ki)),    # V tile
                pl.BlockSpec((1, C, tq), lambda b, qi, ki: (b, 0, qi)),     # x residual
                pl.BlockSpec(memory_space=pltpu.MemorySpace.SMEM),          # gamma
                pl.BlockSpec(memory_space=pltpu.MemorySpace.SMEM),          # true N
            ],
            out_specs=pl.BlockSpec((1, C, tq), lambda b, qi, ki: (b, 0, qi)),
            scratch_shapes=[
                pltpu.VMEM((1, tq), jnp.float32),   # running max
                pltpu.VMEM((1, tq), jnp.float32),   # running denom
                pltpu.VMEM((C, tq), jnp.float32),   # output accumulator
            ]),
        compiler_params=pltpu.CompilerParams(
            dimension_semantics=("parallel", "parallel", "arbitrary"),
            vmem_limit_bytes=int(vmem_limit_bytes)),
        cost_estimate=pl.CostEstimate(flops=int(flops),
                                      transcendentals=int(transcendentals),
                                      bytes_accessed=int(bytes_accessed)),
    )(q_p, k_p, v_p, x, gamma1, n_valid)

    if Np != N:
        out = out[:, :, :N]
    return out.reshape(B, C, H, W)


def self_attn_reference(x, wq, bq, wk, bk, wv, bv, gamma):
    """Pure-JAX reference mirroring the PyTorch forward exactly (f32 throughout)."""
    B, C, H, W = x.shape
    N = H * W
    xf = x.reshape(B, C, N)
    q = jnp.einsum('oc,bcn->bon', wq, xf) + bq.reshape(1, -1, 1)   # (B, Cq, N)
    k = jnp.einsum('oc,bcn->bon', wk, xf) + bk.reshape(1, -1, 1)   # (B, Cq, N)
    v = jnp.einsum('oc,bcn->bon', wv, xf) + bv.reshape(1, -1, 1)   # (B, C,  N)
    energy = jnp.einsum('bcn,bcm->bnm', q, k)                      # n=query, m=key
    attn = jax.nn.softmax(energy, axis=-1)
    out = jnp.einsum('bcm,bnm->bcn', v, attn)                      # (B, C, N)
    return gamma.reshape(()) * out.reshape(B, C, H, W) + x


if __name__ == "__main__":
    # Module config: in_dim=C, nc_reduce=8 -> Cq = C // 8.
    B, C, H, W = 2, 32, 8, 8
    Cq = C // 8

    key = jax.random.PRNGKey(0)
    kx, kq, kk, kv_, kbq, kbk, kbv = jax.random.split(key, 7)

    x = jax.random.normal(kx, (B, C, H, W), dtype=jnp.float32)

    # PyTorch conv-weight layout (out_channels, in_channels) after squeezing the 1x1 kernel.
    wq = 0.1 * jax.random.normal(kq, (Cq, C), dtype=jnp.float32)
    wk = 0.1 * jax.random.normal(kk, (Cq, C), dtype=jnp.float32)
    wv = 0.1 * jax.random.normal(kv_, (C, C), dtype=jnp.float32)
    bq = 0.1 * jax.random.normal(kbq, (Cq,), dtype=jnp.float32)
    bk = 0.1 * jax.random.normal(kbk, (Cq,), dtype=jnp.float32)
    bv = 0.1 * jax.random.normal(kbv, (C,), dtype=jnp.float32)
    # PyTorch inits gamma to zeros(1) (output == input); use a nonzero value so the
    # attention path is actually exercised.
    gamma = jnp.full((1,), 0.5, dtype=jnp.float32)

    out = self_attn_pallas(x, wq, bq, wk, bk, wv, bv, gamma)
    out = jax.block_until_ready(out)

    ref = self_attn_reference(x, wq, bq, wk, bk, wv, bv, gamma)
    assert out.shape == (B, C, H, W)
    # bf16 Q/K/V streams + bf16 exp (v6e/v7x) + approx reciprocal => loose tolerance
    # vs the pure-f32 reference.
    assert jnp.allclose(out, ref, atol=2.5e-2, rtol=2.5e-2), "mismatch vs reference"

    print("KERNEL_OK")
</pallas_src>

<mosaic_0001>
module attributes {stable_mosaic.version = 11 : i64} {
  func.func @_qkv_proj_kernel(%arg0: i32, %arg1: i32, %arg2: memref<1x32x128xf32, #tpu.memory_space<vmem>>, %arg3: memref<4x32xbf16, #tpu.memory_space<vmem>>, %arg4: memref<4x1xf32, #tpu.memory_space<vmem>>, %arg5: memref<4x32xbf16, #tpu.memory_space<vmem>>, %arg6: memref<4x1xf32, #tpu.memory_space<vmem>>, %arg7: memref<32x32xbf16, #tpu.memory_space<vmem>>, %arg8: memref<32x1xf32, #tpu.memory_space<vmem>>, %arg9: memref<1x4x128xbf16, #tpu.memory_space<vmem>>, %arg10: memref<1x4x128xbf16, #tpu.memory_space<vmem>>, %arg11: memref<1x32x128xbf16, #tpu.memory_space<vmem>>) attributes {dimension_semantics = [#tpu.dimension_semantics<parallel>, #tpu.dimension_semantics<parallel>], iteration_bounds = array<i64: 2, 1>, scalar_prefetch = 0 : i64, scratch_operands = 0 : i64, tpu.core_type = #tpu.core_type<tc>, window_params = [{transform_indices = @transform_0, window_bounds = array<i64: 1, 32, 128>}, {pipeline_mode = #tpu.pipeline_mode<synchronous>, transform_indices = @transform_1, window_bounds = array<i64: 4, 32>}, {pipeline_mode = #tpu.pipeline_mode<synchronous>, transform_indices = @transform_2, window_bounds = array<i64: 4, 1>}, {pipeline_mode = #tpu.pipeline_mode<synchronous>, transform_indices = @transform_3, window_bounds = array<i64: 4, 32>}, {pipeline_mode = #tpu.pipeline_mode<synchronous>, transform_indices = @transform_4, window_bounds = array<i64: 4, 1>}, {pipeline_mode = #tpu.pipeline_mode<synchronous>, transform_indices = @transform_5, window_bounds = array<i64: 32, 32>}, {pipeline_mode = #tpu.pipeline_mode<synchronous>, transform_indices = @transform_6, window_bounds = array<i64: 32, 1>}, {transform_indices = @transform_7, window_bounds = array<i64: 1, 4, 128>}, {transform_indices = @transform_8, window_bounds = array<i64: 1, 4, 128>}, {transform_indices = @transform_9, window_bounds = array<i64: 1, 32, 128>}]} {
    %c0 = arith.constant 0 : index
    %c0_0 = arith.constant 0 : index
    %c0_1 = arith.constant 0 : index
    %0 = vector.load %arg2[%c0, %c0_0, %c0_1] : memref<1x32x128xf32, #tpu.memory_space<vmem>>, vector<1x32x128xf32>
    %1 = vector.shape_cast %0 : vector<1x32x128xf32> to vector<32x128xf32>
    %2 = arith.truncf %1 : vector<32x128xf32> to vector<32x128xbf16>
    %c0_2 = arith.constant 0 : index
    %c0_3 = arith.constant 0 : index
    %3 = vector.load %arg3[%c0_2, %c0_3] : memref<4x32xbf16, #tpu.memory_space<vmem>>, vector<4x32xbf16>
    %cst = arith.constant dense<0.000000e+00> : vector<4x128xf32>
    %4 = tpu.matmul %3, %2, %cst {dimension_numbers = #tpu.dot_dimension_numbers<[1], [0], [0], [1], [0, 0, 1, 1], [], []>} : vector<4x32xbf16>, vector<32x128xbf16>, vector<4x128xf32> -> vector<4x128xf32>
    %c0_4 = arith.constant 0 : index
    %c0_5 = arith.constant 0 : index
    %5 = vector.load %arg4[%c0_4, %c0_5] : memref<4x1xf32, #tpu.memory_space<vmem>>, vector<4x1xf32>
    %6 = vector.broadcast %5 : vector<4x1xf32> to vector<4x128xf32>
    %7 = arith.addf %4, %6 : vector<4x128xf32>
    %8 = arith.truncf %7 : vector<4x128xf32> to vector<4x128xbf16>
    %c0_6 = arith.constant 0 : index
    %c0_7 = arith.constant 0 : index
    %c0_8 = arith.constant 0 : index
    %9 = vector.load %arg9[%c0_6, %c0_7, %c0_8] : memref<1x4x128xbf16, #tpu.memory_space<vmem>>, vector<1x4x128xbf16>
    %10 = vector.shape_cast %9 : vector<1x4x128xbf16> to vector<4x128xbf16>
    %11 = vector.shape_cast %8 : vector<4x128xbf16> to vector<1x4x128xbf16>
    tpu.vector_store %arg9[%c0_6, %c0_7, %c0_8], %11 {strides = array<i32>} : memref<1x4x128xbf16, #tpu.memory_space<vmem>>, vector<1x4x128xbf16>,
    %c0_9 = arith.constant 0 : index
    %c0_10 = arith.constant 0 : index
    %12 = vector.load %arg5[%c0_9, %c0_10] : memref<4x32xbf16, #tpu.memory_space<vmem>>, vector<4x32xbf16>
    %cst_11 = arith.constant dense<0.000000e+00> : vector<4x128xf32>
    %13 = tpu.matmul %12, %2, %cst_11 {dimension_numbers = #tpu.dot_dimension_numbers<[1], [0], [0], [1], [0, 0, 1, 1], [], []>} : vector<4x32xbf16>, vector<32x128xbf16>, vector<4x128xf32> -> vector<4x128xf32>
    %c0_12 = arith.constant 0 : index
    %c0_13 = arith.constant 0 : index
    %14 = vector.load %arg6[%c0_12, %c0_13] : memref<4x1xf32, #tpu.memory_space<vmem>>, vector<4x1xf32>
    %15 = vector.broadcast %14 : vector<4x1xf32> to vector<4x128xf32>
    %16 = arith.addf %13, %15 : vector<4x128xf32>
    %17 = arith.truncf %16 : vector<4x128xf32> to vector<4x128xbf16>
    %c0_14 = arith.constant 0 : index
    %c0_15 = arith.constant 0 : index
    %c0_16 = arith.constant 0 : index
    %18 = vector.load %arg10[%c0_14, %c0_15, %c0_16] : memref<1x4x128xbf16, #tpu.memory_space<vmem>>, vector<1x4x128xbf16>
    %19 = vector.shape_cast %18 : vector<1x4x128xbf16> to vector<4x128xbf16>
    %20 = vector.shape_cast %17 : vector<4x128xbf16> to vector<1x4x128xbf16>
    tpu.vector_store %arg10[%c0_14, %c0_15, %c0_16], %20 {strides = array<i32>} : memref<1x4x128xbf16, #tpu.memory_space<vmem>>, vector<1x4x128xbf16>,
    %c0_17 = arith.constant 0 : index
    %c0_18 = arith.constant 0 : index
    %21 = vector.load %arg7[%c0_17, %c0_18] : memref<32x32xbf16, #tpu.memory_space<vmem>>, vector<32x32xbf16>
    %cst_19 = arith.constant dense<0.000000e+00> : vector<32x128xf32>
    %22 = tpu.matmul %21, %2, %cst_19 {dimension_numbers = #tpu.dot_dimension_numbers<[1], [0], [0], [1], [0, 0, 1, 1], [], []>} : vector<32x32xbf16>, vector<32x128xbf16>, vector<32x128xf32> -> vector<32x128xf32>
    %c0_20 = arith.constant 0 : index
    %c0_21 = arith.constant 0 : index
    %23 = vector.load %arg8[%c0_20, %c0_21] : memref<32x1xf32, #tpu.memory_space<vmem>>, vector<32x1xf32>
    %24 = vector.broadcast %23 : vector<32x1xf32> to vector<32x128xf32>
    %25 = arith.addf %22, %24 : vector<32x128xf32>
    %26 = arith.truncf %25 : vector<32x128xf32> to vector<32x128xbf16>
    %c0_22 = arith.constant 0 : index
    %c0_23 = arith.constant 0 : index
    %c0_24 = arith.constant 0 : index
    %27 = vector.load %arg11[%c0_22, %c0_23, %c0_24] : memref<1x32x128xbf16, #tpu.memory_space<vmem>>, vector<1x32x128xbf16>
    %28 = vector.shape_cast %27 : vector<1x32x128xbf16> to vector<32x128xbf16>
    %29 = vector.shape_cast %26 : vector<32x128xbf16> to vector<1x32x128xbf16>
    tpu.vector_store %arg11[%c0_22, %c0_23, %c0_24], %29 {strides = array<i32>} : memref<1x32x128xbf16, #tpu.memory_space<vmem>>, vector<1x32x128xbf16>,
    return
  }
  func.func @transform_0(%arg0: i32, %arg1: i32) -> (i32, i32, i32) {
    %c0_i32 = arith.constant 0 : i32
    %c0_i32_0 = arith.constant 0 : i32
    return %arg0, %c0_i32, %arg1 : i32, i32, i32
  }
  func.func @transform_1(%arg0: i32, %arg1: i32) -> (i32, i32) {
    %c0_i32 = arith.constant 0 : i32
    %c0_i32_0 = arith.constant 0 : i32
    %c0_i32_1 = arith.constant 0 : i32
    return %c0_i32, %c0_i32_0 : i32, i32
  }
  func.func @transform_2(%arg0: i32, %arg1: i32) -> (i32, i32) {
    %c0_i32 = arith.constant 0 : i32
    %c0_i32_0 = arith.constant 0 : i32
    %c0_i32_1 = arith.constant 0 : i32
    return %c0_i32, %c0_i32_0 : i32, i32
  }
  func.func @transform_3(%arg0: i32, %arg1: i32) -> (i32, i32) {
    %c0_i32 = arith.constant 0 : i32
    %c0_i32_0 = arith.constant 0 : i32
    %c0_i32_1 = arith.constant 0 : i32
    return %c0_i32, %c0_i32_0 : i32, i32
  }
  func.func @transform_4(%arg0: i32, %arg1: i32) -> (i32, i32) {
    %c0_i32 = arith.constant 0 : i32
    %c0_i32_0 = arith.constant 0 : i32
    %c0_i32_1 = arith.constant 0 : i32
    return %c0_i32, %c0_i32_0 : i32, i32
  }
  func.func @transform_5(%arg0: i32, %arg1: i32) -> (i32, i32) {
    %c0_i32 = arith.constant 0 : i32
    %c0_i32_0 = arith.constant 0 : i32
    %c0_i32_1 = arith.constant 0 : i32
    return %c0_i32, %c0_i32_0 : i32, i32
  }
  func.func @transform_6(%arg0: i32, %arg1: i32) -> (i32, i32) {
    %c0_i32 = arith.constant 0 : i32
    %c0_i32_0 = arith.constant 0 : i32
    %c0_i32_1 = arith.constant 0 : i32
    return %c0_i32, %c0_i32_0 : i32, i32
  }
  func.func @transform_7(%arg0: i32, %arg1: i32) -> (i32, i32, i32) {
    %c0_i32 = arith.constant 0 : i32
    %c0_i32_0 = arith.constant 0 : i32
    return %arg0, %c0_i32, %arg1 : i32, i32, i32
  }
  func.func @transform_8(%arg0: i32, %arg1: i32) -> (i32, i32, i32) {
    %c0_i32 = arith.constant 0 : i32
    %c0_i32_0 = arith.constant 0 : i32
    return %arg0, %c0_i32, %arg1 : i32, i32, i32
  }
  func.func @transform_9(%arg0: i32, %arg1: i32) -> (i32, i32, i32) {
    %c0_i32 = arith.constant 0 : i32
    %c0_i32_0 = arith.constant 0 : i32
    return %arg0, %c0_i32, %arg1 : i32, i32, i32
  }
}

</mosaic_0001>

<llo_original>
// kernel: tpu_custom_call.1
$region0: #{tpu_custom_call.1}
  #allocation0 [shape = 'u32[]', space=smem, size = 0x4, offset = 0x4, fixed_abs, tag = 'smem constant byte address 0x4 - core index']
  #allocation1 [shape = 'u32[72,128]{1,0:T(1,128)}', space=vmem, size = 0x9000, scoped, tag = 'internal scratch']
  %s0 = inlined_call_operand.hbm [shape: f32[2,32,128], index: 0, kind: input, shape index: {}]
  %s1 = inlined_call_operand.vmem [shape: bf16[4,32], index: 1, kind: input, shape index: {}]
  %s2 = inlined_call_operand.vmem [shape: f32[4,1], index: 2, kind: input, shape index: {}]
  %s3 = inlined_call_operand.vmem [shape: bf16[4,32], index: 3, kind: input, shape index: {}]
  %s4 = inlined_call_operand.vmem [shape: f32[4,1], index: 4, kind: input, shape index: {}]
  %s5 = inlined_call_operand.vmem [shape: bf16[32,32], index: 5, kind: input, shape index: {}]
  %s6 = inlined_call_operand.vmem [shape: f32[32,1], index: 6, kind: input, shape index: {}]
  %s7 = inlined_call_operand.hbm [shape: bf16[2,4,128], index: 7, kind: output, shape index: {0}]
  %s8 = inlined_call_operand.hbm [shape: bf16[2,4,128], index: 8, kind: output, shape index: {1}]
  %s9 = inlined_call_operand.hbm [shape: bf16[2,32,128], index: 9, kind: output, shape index: {2}]
  %10 = xla_tuple %s7, %s8, %s9
  %s11 = sld [smem:[#allocation0]]
  $region81: #{tpu_custom_call.1} parent=0
    _
  %s13 = ssub.s32 1, %s11
  %s14 = scalar_select 0, %s13, %s11
  $region1: #{tpu_custom_call.1} parent=0
    #allocation2 [shape = 'u8[32768]{0}', space=vmem, size = 0x8000, scoped, tag = 'input window, operand 0']
    #allocation3 [shape = 's32[2]{0}', space=sflag, size = 0x8, scoped, tag = 'scoped memory for tpu_custom_call.1']
    #allocation4 [shape = 's32[2]{0}', space=sflag, size = 0x8, scoped, tag = 'scoped memory for tpu_custom_call.1']
    #allocation5 [shape = 'u8[2048]{0}', space=vmem, size = 0x800, scoped, tag = 'output window, operand 0']
    #allocation6 [shape = 'u8[2048]{0}', space=vmem, size = 0x800, scoped, tag = 'output window, operand 1']
    #allocation7 [shape = 's32[2]{0}', space=sflag, size = 0x8, scoped, tag = 'scoped memory for tpu_custom_call.1']
    #allocation8 [shape = 'u8[16384]{0}', space=vmem, size = 0x4000, scoped, tag = 'output window, operand 2']
    %15 = vsyncpa [#allocation3], 0
    %s16 = scalar_lea.sflag [#allocation3], 1
    %17 = vsyncpa %s16, 0
    %18 = vsyncpa [#allocation4], 0
    %s19 = scalar_lea.sflag [#allocation4], 1
    %20 = vsyncpa %s19, 0
    %21 = vsyncpa [#allocation7], 0
    %s22 = scalar_lea.sflag [#allocation7], 1
    %23 = vsyncpa %s22, 0
    loop: start=0, step=1, limit=4
    $region2: #{tpu_custom_call.1} parent=1 // loop_pre_header
      _
    $region3: #{tpu_custom_call.1} parent=1 // loop_header
      %s25 = sphi 0, %s29
      %p26 = scmp.ge.s32.totalorder %s25, 4
      %s32 = sphi 0, %s44
      %s33 = sphi 0, %s40
      %s34 = sphi 0, %s32
      %s35 = sphi 0, %s33
      %s36 = sphi 0, %s34
      %s37 = sphi 0, %s35
      %s49 = sphi 0, %s51
      %s52 = sphi 0, %s49
      %s53 = sphi 0, %s52
      %s69 = sphi 0, %s53
      %s73 = sphi 0, %s73
      %s75 = sphi 0, %s73
      %s76 = sphi 0, %s75
      %s90 = sphi 0, %s76
      %s94 = sphi 0, %s94
      %s96 = sphi 0, %s94
      %s97 = sphi 0, %s96
      %s111 = sphi 0, %s97
      %s115 = sphi 0, %s115
      %s117 = sphi 0, %s115
      %s118 = sphi 0, %s117
      %s132 = sphi 0, %s118
      %s136 = sphi 0, %s136
      %s138 = sphi 0, %s136
      %s139 = sphi 0, %s138
      %s153 = sphi 0, %s139
      %s157 = sphi 0, %s157
      %s159 = sphi 0, %s157
      %s160 = sphi 0, %s159
      %s174 = sphi 0, %s160
      %s178 = sphi 0, %s178
      %s180 = sphi 0, %s178
      %s181 = sphi 0, %s180
      %s195 = sphi 0, %s181
      %s203 = sphi 0, %s205
      %s206 = sphi 0, %s203
      %s207 = sphi 0, %s206
      %s223 = sphi 0, %s207
      %s231 = sphi 0, %s233
      %s234 = sphi 0, %s231
      %s235 = sphi 0, %s234
      %s251 = sphi 0, %s235
      %s259 = sphi 0, %s261
      %s262 = sphi 0, %s259
      %s263 = sphi 0, %s262
      %s279 = sphi 0, %s263
    $region4: #{tpu_custom_call.1} parent=1 // loop_header_branch
      %28 = sbr.rel (%p26) target = $region8
    $region5: #{tpu_custom_call.1} parent=1 // loop_body
      %s30 = ssub.s32 %s25, 1
      %s31 = ssub.s32 %s25, 2
      %s38 = sadd.s32 1, %s33
      %p39 = scmp.ge.s32.totalorder %s38, 1
      %s40 = scalar_select %p39, 0, %s38
      %s41 = sadd.s32 1, %s32
      %s42 = scalar_select %p39, %s41, %s32
      %p43 = scmp.ge.s32.totalorder %s42, 2
      %s44 = scalar_select %p43, 0, %s42
      %s45 = ssub.s32 %s32, %s44
      %s46 = ssub.s32 %s33, %s40
      %s47 = sor.u32 %s45, %s46
      %p48 = scmp.eq.s32.totalorder %s47, 0
      %s50 = sadd.s32 %s49, 1
      %s51 = scalar_select %p48, %s49, %s50
      %p54 = pneg %p48
      %p55 = scmp.eq.s32.totalorder %s25, 1
      %p56 = por %p54, %p55
      %p57 = scmp.ne.s32.totalorder %s49, %s52
      %p58 = scmp.eq.s32.totalorder %s25, 0
      %p59 = por %p57, %p58
      %p60 = scmp.ne.s32.totalorder %s49, %s52
      %p61 = scmp.eq.s32.totalorder %s30, 1
      %p62 = por %p60, %p61
      %p63 = scmp.ne.s32.totalorder %s52, %s53
      %p64 = scmp.eq.s32.totalorder %s30, 0
      %p65 = por %p63, %p64
      %p66 = scmp.ne.s32.totalorder %s52, %s53
      %p67 = scmp.eq.s32.totalorder %s31, 1
      %p68 = por %p66, %p67
      %p70 = scmp.ne.s32.totalorder %s53, %s69
      %p71 = scmp.eq.s32.totalorder %s31, 0
      %p72 = por %p70, %p71
      %s74 = sadd.s32 %s73, 1
      %p77 = scmp.eq.s32.totalorder %s25, 1
      %p78 = scmp.ne.s32.totalorder %s73, %s75
      %p79 = scmp.eq.s32.totalorder %s25, 0
      %p80 = por %p78, %p79
      %p81 = scmp.ne.s32.totalorder %s73, %s75
      %p82 = scmp.eq.s32.totalorder %s30, 1
      %p83 = por %p81, %p82
      %p84 = scmp.ne.s32.totalorder %s75, %s76
      %p85 = scmp.eq.s32.totalorder %s30, 0
      %p86 = por %p84, %p85
      %p87 = scmp.ne.s32.totalorder %s75, %s76
      %p88 = scmp.eq.s32.totalorder %s31, 1
      %p89 = por %p87, %p88
      %p91 = scmp.ne.s32.totalorder %s76, %s90
      %p92 = scmp.eq.s32.totalorder %s31, 0
      %p93 = por %p91, %p92
      %s95 = sadd.s32 %s94, 1
      %p98 = scmp.eq.s32.totalorder %s25, 1
      %p99 = scmp.ne.s32.totalorder %s94, %s96
      %p100 = scmp.eq.s32.totalorder %s25, 0
      %p101 = por %p99, %p100
      %p102 = scmp.ne.s32.totalorder %s94, %s96
      %p103 = scmp.eq.s32.totalorder %s30, 1
      %p104 = por %p102, %p103
      %p105 = scmp.ne.s32.totalorder %s96, %s97
      %p106 = scmp.eq.s32.totalorder %s30, 0
      %p107 = por %p105, %p106
      %p108 = scmp.ne.s32.totalorder %s96, %s97
      %p109 = scmp.eq.s32.totalorder %s31, 1
      %p110 = por %p108, %p109
      %p112 = scmp.ne.s32.totalorder %s97, %s111
      %p113 = scmp.eq.s32.totalorder %s31, 0
      %p114 = por %p112, %p113
      %s116 = sadd.s32 %s115, 1
      %p119 = scmp.eq.s32.totalorder %s25, 1
      %p120 = scmp.ne.s32.totalorder %s115, %s117
      %p121 = scmp.eq.s32.totalorder %s25, 0
      %p122 = por %p120, %p121
      %p123 = scmp.ne.s32.totalorder %s115, %s117
      %p124 = scmp.eq.s32.totalorder %s30, 1
      %p125 = por %p123, %p124
      %p126 = scmp.ne.s32.totalorder %s117, %s118
      %p127 = scmp.eq.s32.totalorder %s30, 0
      %p128 = por %p126, %p127
      %p129 = scmp.ne.s32.totalorder %s117, %s118
      %p130 = scmp.eq.s32.totalorder %s31, 1
      %p131 = por %p129, %p130
      %p133 = scmp.ne.s32.totalorder %s118, %s132
      %p134 = scmp.eq.s32.totalorder %s31, 0
      %p135 = por %p133, %p134
      %s137 = sadd.s32 %s136, 1
      %p140 = scmp.eq.s32.totalorder %s25, 1
      %p141 = scmp.ne.s32.totalorder %s136, %s138
      %p142 = scmp.eq.s32.totalorder %s25, 0
      %p143 = por %p141, %p142
      %p144 = scmp.ne.s32.totalorder %s136, %s138
      %p145 = scmp.eq.s32.totalorder %s30, 1
      %p146 = por %p144, %p145
      %p147 = scmp.ne.s32.totalorder %s138, %s139
      %p148 = scmp.eq.s32.totalorder %s30, 0
      %p149 = por %p147, %p148
      %p150 = scmp.ne.s32.totalorder %s138, %s139
      %p151 = scmp.eq.s32.totalorder %s31, 1
      %p152 = por %p150, %p151
      %p154 = scmp.ne.s32.totalorder %s139, %s153
      %p155 = scmp.eq.s32.totalorder %s31, 0
      %p156 = por %p154, %p155
      %s158 = sadd.s32 %s157, 1
      %p161 = scmp.eq.s32.totalorder %s25, 1
      %p162 = scmp.ne.s32.totalorder %s157, %s159
      %p163 = scmp.eq.s32.totalorder %s25, 0
      %p164 = por %p162, %p163
      %p165 = scmp.ne.s32.totalorder %s157, %s159
      %p166 = scmp.eq.s32.totalorder %s30, 1
      %p167 = por %p165, %p166
      %p168 = scmp.ne.s32.totalorder %s159, %s160
      %p169 = scmp.eq.s32.totalorder %s30, 0
      %p170 = por %p168, %p169
      %p171 = scmp.ne.s32.totalorder %s159, %s160
      %p172 = scmp.eq.s32.totalorder %s31, 1
      %p173 = por %p171, %p172
      %p175 = scmp.ne.s32.totalorder %s160, %s174
      %p176 = scmp.eq.s32.totalorder %s31, 0
      %p177 = por %p175, %p176
      %s179 = sadd.s32 %s178, 1
      %p182 = scmp.eq.s32.totalorder %s25, 1
      %p183 = scmp.ne.s32.totalorder %s178, %s180
      %p184 = scmp.eq.s32.totalorder %s25, 0
      %p185 = por %p183, %p184
      %p186 = scmp.ne.s32.totalorder %s178, %s180
      %p187 = scmp.eq.s32.totalorder %s30, 1
      %p188 = por %p186, %p187
      %p189 = scmp.ne.s32.totalorder %s180, %s181
      %p190 = scmp.eq.s32.totalorder %s30, 0
      %p191 = por %p189, %p190
      %p192 = scmp.ne.s32.totalorder %s180, %s181
      %p193 = scmp.eq.s32.totalorder %s31, 1
      %p194 = por %p192, %p193
      %p196 = scmp.ne.s32.totalorder %s181, %s195
      %p197 = scmp.eq.s32.totalorder %s31, 0
      %p198 = por %p196, %p197
      %s199 = ssub.s32 %s32, %s44
      %s200 = ssub.s32 %s33, %s40
      %s201 = sor.u32 %s199, %s200
      %p202 = scmp.eq.s32.totalorder %s201, 0
      %s204 = sadd.s32 %s203, 1
      %s205 = scalar_select %p202, %s203, %s204
      %p208 = pneg %p202
      %p209 = scmp.eq.s32.totalorder %s25, 1
      %p210 = por %p208, %p209
      %p211 = scmp.ne.s32.totalorder %s203, %s206
      %p212 = scmp.eq.s32.totalorder %s25, 0
      %p213 = por %p211, %p212
      %p214 = scmp.ne.s32.totalorder %s203, %s206
      %p215 = scmp.eq.s32.totalorder %s30, 1
      %p216 = por %p214, %p215
      %p217 = scmp.ne.s32.totalorder %s206, %s207
      %p218 = scmp.eq.s32.totalorder %s30, 0
      %p219 = por %p217, %p218
      %p220 = scmp.ne.s32.totalorder %s206, %s207
      %p221 = scmp.eq.s32.totalorder %s31, 1
      %p222 = por %p220, %p221
      %p224 = scmp.ne.s32.totalorder %s207, %s223
      %p225 = scmp.eq.s32.totalorder %s31, 0
      %p226 = por %p224, %p225
      %s227 = ssub.s32 %s32, %s44
      %s228 = ssub.s32 %s33, %s40
      %s229 = sor.u32 %s227, %s228
      %p230 = scmp.eq.s32.totalorder %s229, 0
      %s232 = sadd.s32 %s231, 1
      %s233 = scalar_select %p230, %s231, %s232
      %p236 = pneg %p230
      %p237 = scmp.eq.s32.totalorder %s25, 1
      %p238 = por %p236, %p237
      %p239 = scmp.ne.s32.totalorder %s231, %s234
      %p240 = scmp.eq.s32.totalorder %s25, 0
      %p241 = por %p239, %p240
      %p242 = scmp.ne.s32.totalorder %s231, %s234
      %p243 = scmp.eq.s32.totalorder %s30, 1
      %p244 = por %p242, %p243
      %p245 = scmp.ne.s32.totalorder %s234, %s235
      %p246 = scmp.eq.s32.totalorder %s30, 0
      %p247 = por %p245, %p246
      %p248 = scmp.ne.s32.totalorder %s234, %s235
      %p249 = scmp.eq.s32.totalorder %s31, 1
      %p250 = por %p248, %p249
      %p252 = scmp.ne.s32.totalorder %s235, %s251
      %p253 = scmp.eq.s32.totalorder %s31, 0
      %p254 = por %p252, %p253
      %s255 = ssub.s32 %s32, %s44
      %s256 = ssub.s32 %s33, %s40
      %s257 = sor.u32 %s255, %s256
      %p258 = scmp.eq.s32.totalorder %s257, 0
      %s260 = sadd.s32 %s259, 1
      %s261 = scalar_select %p258, %s259, %s260
      %p264 = pneg %p258
      %p265 = scmp.eq.s32.totalorder %s25, 1
      %p266 = por %p264, %p265
      %p267 = scmp.ne.s32.totalorder %s259, %s262
      %p268 = scmp.eq.s32.totalorder %s25, 0
      %p269 = por %p267, %p268
      %p270 = scmp.ne.s32.totalorder %s259, %s262
      %p271 = scmp.eq.s32.totalorder %s30, 1
      %p272 = por %p270, %p271
      %p273 = scmp.ne.s32.totalorder %s262, %s263
      %p274 = scmp.eq.s32.totalorder %s30, 0
      %p275 = por %p273, %p274
      %p276 = scmp.ne.s32.totalorder %s262, %s263
      %p277 = scmp.eq.s32.totalorder %s31, 1
      %p278 = por %p276, %p277
      %p280 = scmp.ne.s32.totalorder %s263, %s279
      %p281 = scmp.eq.s32.totalorder %s31, 0
      %p282 = por %p280, %p281
      %p283 = scmp.le.s32.totalorder 1, %s25
      %p284 = scmp.lt.s32.totalorder %s25, 3
      %p285 = pnand %p283, %p284
      %p286 = pneg %p285
      // Predicated region
      $region9: #{tpu_custom_call.1} parent=5 // pred_check
        _
      $region10: #{tpu_custom_call.1} parent=5 // pred_check_branch
        %288 = sbr.rel (%p285) target = $region12
      $region11: #{tpu_custom_call.1} parent=5 // pred_region
        %s289 = ssub.s32 %s25, 1
        // Predicated region
        $region13: #{tpu_custom_call.1} parent=11 // pred_check
          %p290 = pneg %p86
        $region14: #{tpu_custom_call.1} parent=11 // pred_check_branch
          %292 = sbr.rel (%p290) target = $region16
        $region15: #{tpu_custom_call.1} parent=11 // pred_region
          _
        $region16: #{tpu_custom_call.1} parent=11 // pred_fallthru
          _
        // Predicated region
        $region17: #{tpu_custom_call.1} parent=11 // pred_check
          %p293 = pneg %p107
        $region18: #{tpu_custom_call.1} parent=11 // pred_check_branch
          %295 = sbr.rel (%p293) target = $region20
        $region19: #{tpu_custom_call.1} parent=11 // pred_region
          _
        $region20: #{tpu_custom_call.1} parent=11 // pred_fallthru
          _
        // Predicated region
        $region21: #{tpu_custom_call.1} parent=11 // pred_check
          %p296 = pneg %p128
        $region22: #{tpu_custom_call.1} parent=11 // pred_check_branch
          %298 = sbr.rel (%p296) target = $region24
        $region23: #{tpu_custom_call.1} parent=11 // pred_region
          _
        $region24: #{tpu_custom_call.1} parent=11 // pred_fallthru
          _
        // Predicated region
        $region25: #{tpu_custom_call.1} parent=11 // pred_check
          %p299 = pneg %p149
        $region26: #{tpu_custom_call.1} parent=11 // pred_check_branch
          %301 = sbr.rel (%p299) target = $region28
        $region27: #{tpu_custom_call.1} parent=11 // pred_region
          _
        $region28: #{tpu_custom_call.1} parent=11 // pred_fallthru
          _
        // Predicated region
        $region29: #{tpu_custom_call.1} parent=11 // pred_check
          %p302 = pneg %p170
        $region30: #{tpu_custom_call.1} parent=11 // pred_check_branch
          %304 = sbr.rel (%p302) target = $region32
        $region31: #{tpu_custom_call.1} parent=11 // pred_region
          _
        $region32: #{tpu_custom_call.1} parent=11 // pred_fallthru
          _
        // Predicated region
        $region33: #{tpu_custom_call.1} parent=11 // pred_check
          %p305 = pneg %p191
        $region34: #{tpu_custom_call.1} parent=11 // pred_check_branch
          %307 = sbr.rel (%p305) target = $region36
        $region35: #{tpu_custom_call.1} parent=11 // pred_region
          _
        $region36: #{tpu_custom_call.1} parent=11 // pred_fallthru
          _
      $region12: #{tpu_custom_call.1} parent=5 // pred_fallthru
        _
      %p308 = scmp.lt.s32.totalorder %s25, 2
      // Predicated region
      $region37: #{tpu_custom_call.1} parent=5 // pred_check
        %p309 = pneg %p308
      $region38: #{tpu_custom_call.1} parent=5 // pred_check_branch
        %311 = sbr.rel (%p309) target = $region40
      $region39: #{tpu_custom_call.1} parent=5 // pred_region
        // Predicated region
        $region41: #{tpu_custom_call.1} parent=39 // pred_check
          %p312 = pneg %p59
        $region42: #{tpu_custom_call.1} parent=39 // pred_check_branch
          %314 = sbr.rel (%p312) target = $region44
        $region43: #{tpu_custom_call.1} parent=39 // pred_region
          %s315 = sand.u32 %s49, 1
          %s316 = scalar_lea.sflag [#allocation3], %s315
          %s317 = sand.u32 %s49, 1
          %s318 = smul.addr %s317, 32
          %s319 = scalar_lea.vmem [#allocation2], %s318
          %321 = vsyncadd %s316, 0
          %s322 = smul.addr %s32, 4
          %s323 = sadd.s32 %s33, %s322
          %s324 = smul.addr %s323, 8
          %s325 = scalar_lea.hbm %s0, %s324
          %s326 = sshll.u32 %s325, 4
          %s327 = int_to_ptr.hbm [resolvable:$true] %s326
          %s328 = sshll.u32 %s319, 4
          %s329 = int_to_ptr.vmem [resolvable:$true] %s328
          %334 = dma.hbm_to_vmem [thread:$0]  %s327, 512, %s329, %s316, 128, 128, 8
        $region44: #{tpu_custom_call.1} parent=39 // pred_fallthru
          _
      $region40: #{tpu_custom_call.1} parent=5 // pred_fallthru
        _
      %p335 = scmp.le.s32.totalorder 1, %s25
      %p336 = scmp.lt.s32.totalorder %s25, 3
      %p337 = pnand %p335, %p336
      %p338 = pneg %p337
      // Predicated region
      $region45: #{tpu_custom_call.1} parent=5 // pred_check
        _
      $region46: #{tpu_custom_call.1} parent=5 // pred_check_branch
        %340 = sbr.rel (%p337) target = $region48
      $region47: #{tpu_custom_call.1} parent=5 // pred_region
        %s341 = ssub.s32 %s25, 1
        %s342 = sand.u32 %s52, 1
        %s343 = scalar_lea.sflag [#allocation3], %s342
        %s344 = sand.u32 %s52, 1
        %s345 = smul.addr %s344, 32
        %s346 = scalar_lea.vmem [#allocation2], %s345
        // Predicated region
        $region49: #{tpu_custom_call.1} parent=47 // pred_check
          %p347 = pneg %p65
        $region50: #{tpu_custom_call.1} parent=47 // pred_check_branch
          %349 = sbr.rel (%p347) target = $region52
        $region51: #{tpu_custom_call.1} parent=47 // pred_region
          %351 = dma.done %s343, 512
        $region52: #{tpu_custom_call.1} parent=47 // pred_fallthru
          _
        %s352 = sand.u32 %s52, 1
        %s353 = scalar_lea.sflag [#allocation3], %s352
        %s354 = sand.u32 %s52, 1
        %s355 = smul.addr %s354, 32
        %s356 = scalar_lea.vmem [#allocation2], %s355
        %p357 = pneg %p65
        %p358 = pneg %p62
        %p359 = pneg %p86
        %p360 = pneg %p83
        %p361 = pneg %p107
        %p362 = pneg %p104
        %p363 = pneg %p128
        %p364 = pneg %p125
        %p365 = pneg %p149
        %p366 = pneg %p146
        %p367 = pneg %p170
        %p368 = pneg %p167
        %p369 = pneg %p191
        %p370 = pneg %p188
        %p371 = pneg %p219
        %p372 = pneg %p216
        %s373 = sand.u32 %s206, 1
        %s374 = scalar_lea.sflag [#allocation4], %s373
        %s375 = sand.u32 %s206, 1
        %s376 = smul.addr %s375, 2
        %s377 = scalar_lea.vmem [#allocation5], %s376
        %p378 = pneg %p247
        %p379 = pneg %p244
        %s380 = sand.u32 %s30, 1
        %s381 = scalar_lea.sflag [#allocation7], %s380
        %s382 = sand.u32 %s234, 1
        %s383 = smul.addr %s382, 2
        %s384 = scalar_lea.vmem [#allocation6], %s383
        %p385 = pneg %p275
        %p386 = pneg %p272
        %s387 = sand.u32 %s30, 1
        %s388 = scalar_lea.sflag [#allocation7], %s387
        %s389 = sand.u32 %s262, 1
        %s390 = smul.addr %s389, 16
        %s391 = scalar_lea.vmem [#allocation8], %s390
        %v393 = vld [vmem:[%s346] sm:$0xff]
        %v394 = vld [vmem:[%s346 + $0x8] sm:$0xff]
        %v395 = vld [vmem:[%s346 + $0x10] sm:$0xff]
        %v396 = vld [vmem:[%s346 + $0x18] sm:$0xff]
        %v397 = vpack.c.bf16 %v394, %v393
        %v398 = vpack.c.bf16 %v396, %v395
        %v399 = vld [vmem:[%s1] sm:$0x3]
        %v400 = vld [vmem:[%s2] sm:$0xf]
        %402 = vset.pattern.permute.xlu0 0
        %403 = vperm.xlu0 %402, %v400
        %v404 = vpop.permute.xlu0 %403
        %vm406 = vcmask 261120
        %v408 = vsel %vm406, %v399, 0
        %410 = vmatpush.bf16.msra.mxu0 0
        %411 = vmatpush.bf16.msra.mxu0 0
        %412 = vmatpush.bf16.msra.mxu0 0
        %413 = vmatpush.bf16.msra.mxu0 0
        %414 = vmatpush.bf16.msra.mxu0 0
        %415 = vmatpush.bf16.msra.mxu0 0
        %416 = vmatpush.bf16.msra.mxu0 %v398
        %417 = vmatpush.bf16.msra.mxu0 %v397
        %418 = vmatmul.bf16.gmra.mxu0 %v408
        %v419 = vpop.f32.mrf.mxu0
        %v420 = vadd.f32 %v404, %v419
        %v421 = vpop.f32.mrf.mxu0
        %422 = vdwg.mxu0
        %v423 = vpack.c.bf16 %v420, %v420
        %424 = vst [vmem:[%s377] sm:$0x3] %v423
        %v425 = vld [vmem:[%s3] sm:$0x3]
        %v426 = vld [vmem:[%s4] sm:$0xf]
        %428 = vset.pattern.permute.xlu0 0
        %429 = vperm.xlu0 %428, %v426
        %v430 = vpop.permute.xlu0 %429
        %v433 = vsel %vm406, %v425, 0
        %435 = vmatpush.bf16.msra.mxu0 0
        %436 = vmatpush.bf16.msra.mxu0 0
        %437 = vmatpush.bf16.msra.mxu0 0
        %438 = vmatpush.bf16.msra.mxu0 0
        %439 = vmatpush.bf16.msra.mxu0 0
        %440 = vmatpush.bf16.msra.mxu0 0
        %441 = vmatpush.bf16.msra.mxu0 %v398
        %442 = vmatpush.bf16.msra.mxu0 %v397
        %443 = vmatmul.bf16.gmra.mxu0 %v433
        %v444 = vpop.f32.mrf.mxu0
        %v445 = vadd.f32 %v430, %v444
        %v446 = vpop.f32.mrf.mxu0
        %447 = vdwg.mxu0
        %v448 = vpack.c.bf16 %v445, %v445
        %449 = vst [vmem:[%s384] sm:$0x3] %v448
        %v450 = vld [vmem:[%s5] sm:$0xf]
        %v451 = vld [vmem:[%s5 + $0x4] sm:$0xf]
        %v452 = vld [vmem:[%s5 + $0x8] sm:$0xf]
        %v453 = vld [vmem:[%s5 + $0xc] sm:$0xf]
        %v454 = vld [vmem:[%s6] sm:$0xff]
        %v455 = vld [vmem:[%s6 + $0x8] sm:$0xff]
        %v456 = vld [vmem:[%s6 + $0x10] sm:$0xff]
        %v457 = vld [vmem:[%s6 + $0x18] sm:$0xff]
        %459 = vset.pattern.permute.xlu0 0
        %460 = vperm.xlu0 %459, %v454
        %v461 = vpop.permute.xlu0 %460
        %464 = vset.pattern.permute.xlu0 0
        %465 = vperm.xlu0 %464, %v455
        %v466 = vpop.permute.xlu0 %465
        %469 = vset.pattern.permute.xlu0 0
        %470 = vperm.xlu0 %469, %v456
        %v471 = vpop.permute.xlu0 %470
        %474 = vset.pattern.permute.xlu0 0
        %475 = vperm.xlu0 %474, %v457
        %v476 = vpop.permute.xlu0 %475
        %v482 = vunpack.c.l.b16 %v450
        %v483 = vunpack.c.l.b16 %v451
        %v484 = vunpack.c.l.b16 %v452
        %v485 = vunpack.c.l.b16 %v453
        %v486 = vpack.c.b16 %v483, %v482
        %v487 = vpack.c.b16 %v485, %v484
        %v489 = vsel %vm406, %v486, 0
        %v492 = vsel %vm406, %v487, 0
        %494 = vmatpush.bf16.msra.mxu0 0
        %495 = vmatpush.bf16.msra.mxu0 0
        %496 = vmatpush.bf16.msra.mxu0 0
        %497 = vmatpush.bf16.msra.mxu0 0
        %498 = vmatpush.bf16.msra.mxu0 0
        %499 = vmatpush.bf16.msra.mxu0 0
        %500 = vmatpush.bf16.msra.mxu0 %v398
        %501 = vmatpush.bf16.msra.mxu0 %v397
        %502 = vmatmul.bf16.gmra.mxu0 %v489
        %v503 = vpop.f32.mrf.mxu0
        %v504 = vadd.f32 %v461, %v503
        %v505 = vpop.f32.mrf.mxu0
        %v506 = vadd.f32 %v466, %v505
        %507 = vmatmul.bf16.gmra.mxu0 %v492
        %v508 = vpop.f32.mrf.mxu0
        %v509 = vadd.f32 %v471, %v508
        %v510 = vpop.f32.mrf.mxu0
        %v511 = vadd.f32 %v476, %v510
        %512 = vdwg.mxu0
        %v513 = vpack.c.bf16 %v504, %v504
        %v514 = vpack.c.bf16 %v506, %v506
        %v515 = vpack.c.bf16 %v509, %v509
        %v516 = vpack.c.bf16 %v511, %v511
        %517 = vst [vmem:[%s391] sm:$0xf] %v513
        %518 = vst [vmem:[%s391 + $0x4] sm:$0xf] %v514
        %519 = vst [vmem:[%s391 + $0x8] sm:$0xf] %v515
        %520 = vst [vmem:[%s391 + $0xc] sm:$0xf] %v516
        %s521 = sand.u32 %s206, 1
        %s522 = scalar_lea.sflag [#allocation4], %s521
        %s523 = sand.u32 %s206, 1
        %s524 = smul.addr %s523, 2
        %s525 = scalar_lea.vmem [#allocation5], %s524
        %s526 = sand.u32 %s30, 1
        %s527 = scalar_lea.sflag [#allocation7], %s526
        %s528 = sand.u32 %s234, 1
        %s529 = smul.addr %s528, 2
        %s530 = scalar_lea.vmem [#allocation6], %s529
        %s531 = sand.u32 %s30, 1
        %s532 = scalar_lea.sflag [#allocation7], %s531
        %s533 = sand.u32 %s262, 1
        %s534 = smul.addr %s533, 16
        %s535 = scalar_lea.vmem [#allocation8], %s534
        // Predicated region
        $region53: #{tpu_custom_call.1} parent=47 // pred_check
          %p536 = pneg %p216
        $region54: #{tpu_custom_call.1} parent=47 // pred_check_branch
          %538 = sbr.rel (%p536) target = $region56
        $region55: #{tpu_custom_call.1} parent=47 // pred_region
          %540 = vsyncadd %s522, 0
          %s541 = sadd.s32 %s35, %s34
          %s542 = smul.addr %s541, 2
          %s543 = scalar_lea.hbm %s7, %s542
          %s545 = sshll.u32 %s525, 4
          %s546 = int_to_ptr.vmem [resolvable:$true] %s545
          %s547 = sshll.u32 %s543, 4
          %s548 = int_to_ptr.hbm [resolvable:$true] %s547
          %550 = dma.vmem_to_hbm [thread:$0]  %s546, 32, %s548, %s522
        $region56: #{tpu_custom_call.1} parent=47 // pred_fallthru
          _
        // Predicated region
        $region57: #{tpu_custom_call.1} parent=47 // pred_check
          %p551 = pneg %p244
        $region58: #{tpu_custom_call.1} parent=47 // pred_check_branch
          %553 = sbr.rel (%p551) target = $region60
        $region59: #{tpu_custom_call.1} parent=47 // pred_region
          %555 = vsyncadd %s527, 0
          %s556 = sadd.s32 %s35, %s34
          %s557 = smul.addr %s556, 2
          %s558 = scalar_lea.hbm %s8, %s557
          %s560 = sshll.u32 %s530, 4
          %s561 = int_to_ptr.vmem [resolvable:$true] %s560
          %s562 = sshll.u32 %s558, 4
          %s563 = int_to_ptr.hbm [resolvable:$true] %s562
          %565 = dma.vmem_to_hbm [thread:$0]  %s561, 32, %s563, %s527
        $region60: #{tpu_custom_call.1} parent=47 // pred_fallthru
          _
        // Predicated region
        $region61: #{tpu_custom_call.1} parent=47 // pred_check
          %p566 = pneg %p272
        $region62: #{tpu_custom_call.1} parent=47 // pred_check_branch
          %568 = sbr.rel (%p566) target = $region64
        $region63: #{tpu_custom_call.1} parent=47 // pred_region
          %570 = vsyncadd %s532, 0
          %s571 = smul.addr %s34, 4
          %s572 = sadd.s32 %s35, %s571
          %s573 = smul.addr %s572, 4
          %s574 = scalar_lea.hbm %s9, %s573
          %s575 = sshll.u32 %s535, 4
          %s576 = int_to_ptr.vmem [resolvable:$true] %s575
          %s577 = sshll.u32 %s574, 4
          %s578 = int_to_ptr.hbm [resolvable:$true] %s577
          %583 = dma.vmem_to_hbm [thread:$0]  %s576, 256, %s578, %s532, 64, 64, 4
        $region64: #{tpu_custom_call.1} parent=47 // pred_fallthru
          _
      $region48: #{tpu_custom_call.1} parent=5 // pred_fallthru
        _
      %p584 = scmp.le.s32.totalorder 2, %s25
      // Predicated region
      $region65: #{tpu_custom_call.1} parent=5 // pred_check
        %p585 = pneg %p584
      $region66: #{tpu_custom_call.1} parent=5 // pred_check_branch
        %587 = sbr.rel (%p585) target = $region68
      $region67: #{tpu_custom_call.1} parent=5 // pred_region
        %s588 = ssub.s32 %s25, 2
        // Predicated region
        $region69: #{tpu_custom_call.1} parent=67 // pred_check
          %p589 = pneg %p222
        $region70: #{tpu_custom_call.1} parent=67 // pred_check_branch
          %591 = sbr.rel (%p589) target = $region72
        $region71: #{tpu_custom_call.1} parent=67 // pred_region
          %s592 = sand.u32 %s207, 1
          %s593 = scalar_lea.sflag [#allocation4], %s592
          %s594 = sand.u32 %s207, 1
          %s595 = smul.addr %s594, 2
          %s596 = scalar_lea.vmem [#allocation5], %s595
          %598 = dma.done %s593, 32
        $region72: #{tpu_custom_call.1} parent=67 // pred_fallthru
          _
        // Predicated region
        $region73: #{tpu_custom_call.1} parent=67 // pred_check
          %p599 = pneg %p250
        $region74: #{tpu_custom_call.1} parent=67 // pred_check_branch
          %601 = sbr.rel (%p599) target = $region76
        $region75: #{tpu_custom_call.1} parent=67 // pred_region
          %s602 = sand.u32 %s31, 1
          %s603 = scalar_lea.sflag [#allocation7], %s602
          %s604 = sand.u32 %s235, 1
          %s605 = smul.addr %s604, 2
          %s606 = scalar_lea.vmem [#allocation6], %s605
          %608 = dma.done %s603, 32
        $region76: #{tpu_custom_call.1} parent=67 // pred_fallthru
          _
        // Predicated region
        $region77: #{tpu_custom_call.1} parent=67 // pred_check
          %p609 = pneg %p278
        $region78: #{tpu_custom_call.1} parent=67 // pred_check_branch
          %611 = sbr.rel (%p609) target = $region80
        $region79: #{tpu_custom_call.1} parent=67 // pred_region
          %s612 = sand.u32 %s31, 1
          %s613 = scalar_lea.sflag [#allocation7], %s612
          %s614 = sand.u32 %s263, 1
          %s615 = smul.addr %s614, 16
          %s616 = scalar_lea.vmem [#allocation8], %s615
          %618 = dma.done %s613, 256
        $region80: #{tpu_custom_call.1} parent=67 // pred_fallthru
          _
      $region68: #{tpu_custom_call.1} parent=5 // pred_fallthru
        _
    $region6: #{tpu_custom_call.1} parent=1 // loop_footer
      %s29 = sadd.s32 1, %s25
    $region7: #{tpu_custom_call.1} parent=1 // loop_footer_branch
      %24 = sbr.rel target = $region3
    $region8: #{tpu_custom_call.1} parent=1 // loop_exit
      _
    %619 = vsyncpa [#allocation3], 1
    %s620 = scalar_lea.sflag [#allocation3], 1
    %621 = vsyncpa %s620, 1
    %622 = vsyncpa [#allocation4], 1
    %s623 = scalar_lea.sflag [#allocation4], 1
    %624 = vsyncpa %s623, 1
    %625 = vsyncpa [#allocation7], 1
    %s626 = scalar_lea.sflag [#allocation7], 1
    %627 = vsyncpa %s626, 1

</llo_original>
